<compile_context>
chip_gen: v7x
topology: tpu7x:2x2x1
jax: 0.10.0
libtpu: 0.0.40
codegen_flags: <defaults>
</compile_context>

<pallas_src>
import functools

import jax
import jax.numpy as jnp
from jax.experimental import pallas as pl
from jax.experimental.pallas import tpu as pltpu


_LANE = 128
_ROW_ALIGN = 32                         # legal block granularity for both f32 (8,128) and int8 (32,128)
_TARGET_STEP_BYTES = 6 * 1024 * 1024    # ~6 MiB of HBM data per grid step


def _round_up(x, m):
    return (x + m - 1) // m * m


def _dc_bd_kernel(logits_ref, target_ref, bound_ref, out_ref, acc_ref, *,
                  steps_per_split, wanted_lo, wanted_n, wanted_mult,
                  S_true, needs_mask):
    """One (batch b, split n, spatial step s) grid cell.

    logits_ref: (1, C, TSR, 128)       target_ref: (1, 1, TSR, 128) int8/int32
    bound_ref:  (1, C, TSR, 128)       out_ref:    (1, 1, 4, C, 128) f32 (written at last step)
    acc_ref:    (4, C, 128) f32 VMEM scratch (lane-dense accumulator):
        row 0: per-channel sum of softmax * onehot(target)        (tp)
        row 1: per-channel sum of softmax                         (fp = row1 - row0 in tail)
        row 2: per-channel label histogram                        (fn = row2 - row0 in tail)
        row 3: per-channel boundary-loss partial sums
    """
    _, C, TSR, _ = logits_ref.shape
    s = pl.program_id(2)

    @pl.when(s == 0)
    def _init():
        acc_ref[...] = jnp.zeros_like(acc_ref)

    # ---- softmax over channels. The channel axis is a leading (non-layout) dim, so the
    #      max/sum over it lower to elementwise VPU ops on fully dense vregs. ----
    x = logits_ref[0].astype(jnp.float32)                       # (C, TSR, 128)
    x_max = jnp.max(x, axis=0, keepdims=True)
    e = jnp.exp(x - x_max)
    inv_den = pl.reciprocal(jnp.sum(e, axis=0, keepdims=True), approx=False)
    sm = e * inv_den                                            # (C, TSR, 128)

    # ---- select-based one-hot: compare labels against the channel index ----
    tgt = target_ref[0].astype(jnp.int32)                       # (1, TSR, 128)
    cls = jax.lax.broadcasted_iota(jnp.int32, (C, TSR, _LANE), 0)
    eqf = (tgt == cls).astype(jnp.float32)                      # (C, TSR, 128)

    if needs_mask:
        # Zero out contributions of spatial padding (positions >= S_true).
        blk = pl.program_id(1) * steps_per_split + s            # global spatial block index
        rows = jax.lax.broadcasted_iota(jnp.int32, (1, TSR, _LANE), 1)
        lanes = jax.lax.broadcasted_iota(jnp.int32, (1, TSR, _LANE), 2)
        gpos = (blk * TSR + rows) * _LANE + lanes
        valid = (gpos < S_true).astype(jnp.float32)             # (1, TSR, 128)
        sm = sm * valid
        eqf = eqf * valid

    # ---- lane-dense partial reductions: (C, TSR, 128) -> (C, 128), accumulated in VMEM scratch.
    #      No narrow masked stores per step; the tiny output block is written once at the end. ----
    acc_ref[0] += jnp.sum(eqf * sm, axis=1)                     # tp
    acc_ref[1] += jnp.sum(sm, axis=1)                           # softmax sum
    acc_ref[2] += jnp.sum(eqf, axis=1)                          # label histogram

    # ---- boundary-loss partials: softmax * distance map, wanted channels only ----
    if wanted_lo is not None:
        # wanted classes form a contiguous unique range [lo, lo + nw)
        lo, nw = wanted_lo, wanted_n
        bnd = bound_ref[0, lo:lo + nw].astype(jnp.float32)      # (nw, TSR, 128)
        acc_ref[3, lo:lo + nw, :] += jnp.sum(sm[lo:lo + nw] * bnd, axis=1)
    else:
        # general (possibly non-contiguous / repeated) wanted classes
        for c, mult in wanted_mult:
            prod = sm[c] * bound_ref[0, c].astype(jnp.float32)  # (TSR, 128)
            if mult != 1:
                prod = prod * float(mult)
            acc_ref[3, c, :] += jnp.sum(prod, axis=0)

    @pl.when(s == steps_per_split - 1)
    def _finalize():
        out_ref[0, 0] = acc_ref[...]


def adaptive_weighted_dc_bd_loss(net_output, target, bound, *,
                                 wanted_classes,
                                 batch_dice=False, do_bg=False, smooth=1.0):
    """Forward of Adptive_weighted_DC_BD_loss (= SoftDiceLoss(softmax, square=False) + BDLoss).

    net_output: (B, C, H, W) float32 or bfloat16 logits (bf16 halves the dominant HBM streams;
                the kernel upcasts and accumulates in f32 either way).
    target:     (B, 1, H, W) or (B, H, W) integer label map.
    bound:      (B, C, H, W) precomputed distance map (same layout/dtype class as net_output).
    """
    B, C, H, W = net_output.shape
    S = H * W
    wc = tuple(int(c) for c in wanted_classes)
    nw = len(wc)
    assert nw >= 1 and all(0 <= c < C for c in wc)

    if target.ndim == 3:
        target = target[:, None]

    # int8 labels: 4x less HBM traffic for the label stream.
    tgt_dtype = jnp.int8 if C <= 127 else jnp.int32

    # --- spatial tiling: rows of 128 lanes, sized by bytes (~6 MiB per grid step) ---
    SR = pl.cdiv(S, _LANE)
    bytes_per_row = _LANE * (C * jnp.dtype(net_output.dtype).itemsize
                             + C * jnp.dtype(bound.dtype).itemsize
                             + jnp.dtype(tgt_dtype).itemsize)
    # TODO(synk): for extremely large C the minimum 32-row block may exceed the VMEM budget;
    # typical segmentation channel counts are far below that.
    cap = max(_ROW_ALIGN, (_TARGET_STEP_BYTES // bytes_per_row) // _ROW_ALIGN * _ROW_ALIGN)
    SR32 = _round_up(SR, _ROW_ALIGN)
    num_blocks = pl.cdiv(SR32, cap)
    TSR = _round_up(pl.cdiv(SR32, num_blocks), _ROW_ALIGN)      # balanced block size, minimal padding
    SR_pad = num_blocks * TSR
    S_pad = SR_pad * _LANE
    needs_mask = (S_pad != S)

    # Split the spatial axis into a second "parallel" grid dim so both v7x TensorCores stay busy
    # even at B == 1 (harmless no-op on single-core v5e/v6e).
    NSPLIT = 2 if (num_blocks % 2 == 0 and num_blocks >= 2) else 1
    sps = num_blocks // NSPLIT                                   # steps per split

    def _prep(a, dtype):
        a = a.reshape(B, -1, S).astype(dtype)
        if S_pad != S:
            a = jnp.pad(a, ((0, 0), (0, 0), (0, S_pad - S)))
        return a.reshape(B, a.shape[1], SR_pad, _LANE)

    logits = _prep(net_output, net_output.dtype)                 # (B, C, SR_pad, 128)
    tgt = _prep(target, tgt_dtype)                               # (B, 1, SR_pad, 128)
    bnd = _prep(bound, bound.dtype)                              # (B, C, SR_pad, 128)  (no channel gather)

    # --- static wanted-class handling ---
    wc_sorted = tuple(sorted(set(wc)))
    contiguous = (len(wc_sorted) == nw and
                  wc_sorted == tuple(range(wc_sorted[0], wc_sorted[0] + nw)))
    if contiguous:
        wanted_lo, wanted_n, wanted_mult = wc_sorted[0], nw, None
    else:
        mult = {}
        for c in wc:
            mult[c] = mult.get(c, 0) + 1
        wanted_lo, wanted_n, wanted_mult = None, None, tuple(sorted(mult.items()))

    kernel = functools.partial(
        _dc_bd_kernel,
        steps_per_split=sps,
        wanted_lo=wanted_lo, wanted_n=wanted_n, wanted_mult=wanted_mult,
        S_true=S, needs_mask=needs_mask)

    acc = pl.pallas_call(
        kernel,
        out_shape=jax.ShapeDtypeStruct((B, NSPLIT, 4, C, _LANE), jnp.float32),
        grid_spec=pltpu.PrefetchScalarGridSpec(
            num_scalar_prefetch=0,
            grid=(B, NSPLIT, sps),
            in_specs=[
                pl.BlockSpec((1, C, TSR, _LANE), lambda b, n, s: (b, 0, n * sps + s, 0)),
                pl.BlockSpec((1, 1, TSR, _LANE), lambda b, n, s: (b, 0, n * sps + s, 0)),
                pl.BlockSpec((1, C, TSR, _LANE), lambda b, n, s: (b, 0, n * sps + s, 0)),
            ],
            out_specs=pl.BlockSpec((1, 1, 4, C, _LANE), lambda b, n, s: (b, n, 0, 0, 0)),
            scratch_shapes=[pltpu.VMEM((4, C, _LANE), jnp.float32)],
        ),
        compiler_params=pltpu.CompilerParams(
            dimension_semantics=("parallel", "parallel", "arbitrary"),
            vmem_limit_bytes=48 * 1024 * 1024,
        ),
    )(logits, tgt, bnd)

    # --- JAX tail: reduce the spatial split + lane partials, then the small per-class algebra ---
    red = jnp.sum(acc, axis=(1, 4))                              # (B, 4, C)
    tp = red[:, 0]
    sm_sum = red[:, 1]
    cnt = red[:, 2]
    bd_pc = red[:, 3]

    # SoftDiceLoss (square=False): fp/fn recovered algebraically
    fp = sm_sum - tp            # sum(sm * (1 - onehot)) = sum(sm) - tp
    fn = cnt - tp               # sum((1 - sm) * onehot) = sum(onehot) - tp
    if batch_dice:
        tp, fp, fn = tp.sum(0), fp.sum(0), fn.sum(0)
    dc = (2.0 * tp + smooth) / (2.0 * tp + fp + fn + smooth)
    if not do_bg:
        dc = dc[1:] if batch_dice else dc[:, 1:]
    dc_loss = -jnp.mean(dc)

    # BDLoss: mean over (B, len(wanted_classes), H, W) of softmax * bound
    bd_loss = jnp.sum(bd_pc) / (B * nw * S)

    # TODO(synk): the original forward's `iou` computation uses bitwise &/| on float tensors and
    # reduces a 2-D tensor over dims (1,2,3); it is unused, ill-typed dead code that would raise
    # in PyTorch, so it is intentionally omitted here.
    return dc_loss + bd_loss


if __name__ == "__main__":
    key = jax.random.PRNGKey(0)
    B, C, H, W = 2, 4, 16, 16
    k1, k2, k3 = jax.random.split(key, 3)
    net_output = jax.random.normal(k1, (B, C, H, W), dtype=jnp.float32)
    target = jax.random.randint(k2, (B, 1, H, W), 0, C, dtype=jnp.int32)
    bound = jax.random.normal(k3, (B, C, H, W), dtype=jnp.float32)

    wanted_classes = (1, 2, 3)   # foreground classes (exclude background), as in bd_kwargs
    loss = adaptive_weighted_dc_bd_loss(
        net_output, target, bound,
        wanted_classes=wanted_classes,
        batch_dice=False, do_bg=False, smooth=1.0)
    loss = jax.block_until_ready(loss)

    # pure-JAX reference for validation
    def ref(net_output, target, bound):
        x = jax.nn.softmax(net_output, axis=1)
        y1h = jax.nn.one_hot(target[:, 0], C, axis=1, dtype=jnp.float32)
        tp = jnp.sum(x * y1h, axis=(2, 3))
        fp = jnp.sum(x * (1.0 - y1h), axis=(2, 3))
        fn = jnp.sum((1.0 - x) * y1h, axis=(2, 3))
        dc = (2.0 * tp + 1.0) / (2.0 * tp + fp + fn + 1.0)
        dc_loss = -jnp.mean(dc[:, 1:])
        wcs = jnp.asarray(wanted_classes)
        bd_loss = jnp.mean(x[:, wcs] * bound[:, wcs])
        return dc_loss + bd_loss

    r = jax.block_until_ready(ref(net_output, target, bound))
    assert jnp.allclose(loss, r, atol=1e-5, rtol=1e-5), (loss, r)
    print("KERNEL_OK")
</pallas_src>

<mosaic_0001>
module attributes {stable_mosaic.version = 11 : i64} {
  func.func @_dc_bd_kernel(%arg0: i32, %arg1: i32, %arg2: i32, %arg3: memref<1x4x32x128xf32, #tpu.memory_space<vmem>>, %arg4: memref<1x1x32x128xi8, #tpu.memory_space<vmem>>, %arg5: memref<1x4x32x128xf32, #tpu.memory_space<vmem>>, %arg6: memref<1x1x4x4x128xf32, #tpu.memory_space<vmem>>, %arg7: memref<4x4x128xf32, #tpu.memory_space<vmem>>) attributes {dimension_semantics = [#tpu.dimension_semantics<parallel>, #tpu.dimension_semantics<parallel>, #tpu.dimension_semantics<arbitrary>], iteration_bounds = array<i64: 2, 1, 1>, scalar_prefetch = 0 : i64, scratch_operands = 1 : i64, tpu.core_type = #tpu.core_type<tc>, window_params = [{transform_indices = @transform_0, window_bounds = array<i64: 1, 4, 32, 128>}, {transform_indices = @transform_1, window_bounds = array<i64: 1, 1, 32, 128>}, {transform_indices = @transform_2, window_bounds = array<i64: 1, 4, 32, 128>}, {transform_indices = @transform_3, window_bounds = array<i64: 1, 1, 4, 4, 128>}]} {
    %c0_i32 = arith.constant 0 : i32
    %0 = arith.cmpi eq, %arg2, %c0_i32 : i32
    %1 = arith.extui %0 : i1 to i32
    %c0_i32_0 = arith.constant 0 : i32
    %2 = arith.cmpi ne, %1, %c0_i32_0 : i32
    scf.if %2 {
      %cst_40 = arith.constant 0.000000e+00 : f32
      %77 = vector.broadcast %cst_40 : f32 to vector<4x4x128xf32>
      %c0_41 = arith.constant 0 : index
      %c0_42 = arith.constant 0 : index
      %c0_43 = arith.constant 0 : index
      %78 = vector.load %arg7[%c0_41, %c0_42, %c0_43] : memref<4x4x128xf32, #tpu.memory_space<vmem>>, vector<4x4x128xf32>
      tpu.vector_store %arg7[%c0_41, %c0_42, %c0_43], %77 {strides = array<i32>} : memref<4x4x128xf32, #tpu.memory_space<vmem>>, vector<4x4x128xf32>,
    } else {
    }
    %c0 = arith.constant 0 : index
    %c0_1 = arith.constant 0 : index
    %c0_2 = arith.constant 0 : index
    %c0_3 = arith.constant 0 : index
    %3 = vector.load %arg3[%c0, %c0_1, %c0_2, %c0_3] : memref<1x4x32x128xf32, #tpu.memory_space<vmem>>, vector<1x4x32x128xf32>
    %4 = vector.shape_cast %3 : vector<1x4x32x128xf32> to vector<4x32x128xf32>
    %cst = arith.constant dense<0xFF800000> : vector<32x128xf32>
    %5 = vector.multi_reduction <maximumf>, %4, %cst [0] : vector<4x32x128xf32> to vector<32x128xf32>
    %6 = vector.shape_cast %5 : vector<32x128xf32> to vector<1x32x128xf32>
    %7 = vector.broadcast %6 : vector<1x32x128xf32> to vector<4x32x128xf32>
    %8 = arith.subf %4, %7 : vector<4x32x128xf32>
    %9 = math.exp %8 : vector<4x32x128xf32>
    %cst_4 = arith.constant dense<0.000000e+00> : vector<32x128xf32>
    %10 = vector.multi_reduction <add>, %9, %cst_4 [0] : vector<4x32x128xf32> to vector<32x128xf32>
    %11 = vector.shape_cast %10 : vector<32x128xf32> to vector<1x32x128xf32>
    %12 = tpu.reciprocal %11 : vector<1x32x128xf32> -> vector<1x32x128xf32>
    %13 = vector.broadcast %12 : vector<1x32x128xf32> to vector<4x32x128xf32>
    %14 = arith.mulf %9, %13 : vector<4x32x128xf32>
    %c0_5 = arith.constant 0 : index
    %c0_6 = arith.constant 0 : index
    %c0_7 = arith.constant 0 : index
    %c0_8 = arith.constant 0 : index
    %15 = vector.load %arg4[%c0_5, %c0_6, %c0_7, %c0_8] : memref<1x1x32x128xi8, #tpu.memory_space<vmem>>, vector<1x1x32x128xi8>
    %16 = vector.shape_cast %15 : vector<1x1x32x128xi8> to vector<1x32x128xi8>
    %17 = arith.extsi %16 : vector<1x32x128xi8> to vector<1x32x128xi32>
    %18 = tpu.iota {dimensions = array<i32: 0>} : vector<4x32x128xi32>
    %19 = vector.broadcast %17 : vector<1x32x128xi32> to vector<4x32x128xi32>
    %20 = arith.cmpi eq, %19, %18 : vector<4x32x128xi32>
    %21 = arith.extui %20 : vector<4x32x128xi1> to vector<4x32x128xi32>
    %22 = arith.sitofp %21 : vector<4x32x128xi32> to vector<4x32x128xf32>
    %c1_i32 = arith.constant 1 : i32
    %23 = arith.muli %arg1, %c1_i32 : i32
    %24 = arith.addi %23, %arg2 : i32
    %25 = tpu.iota {dimensions = array<i32: 1>} : vector<1x32x128xi32>
    %26 = tpu.iota {dimensions = array<i32: 2>} : vector<1x32x128xi32>
    %c32_i32 = arith.constant 32 : i32
    %27 = arith.muli %24, %c32_i32 : i32
    %28 = vector.broadcast %27 : i32 to vector<1x32x128xi32>
    %29 = arith.addi %28, %25 : vector<1x32x128xi32>
    %c128_i32 = arith.constant 128 : i32
    %30 = vector.broadcast %c128_i32 : i32 to vector<1x32x128xi32>
    %31 = arith.muli %29, %30 : vector<1x32x128xi32>
    %32 = arith.addi %31, %26 : vector<1x32x128xi32>
    %c256_i32 = arith.constant 256 : i32
    %33 = vector.broadcast %c256_i32 : i32 to vector<1x32x128xi32>
    %34 = arith.cmpi slt, %32, %33 : vector<1x32x128xi32>
    %35 = arith.extui %34 : vector<1x32x128xi1> to vector<1x32x128xi32>
    %36 = arith.sitofp %35 : vector<1x32x128xi32> to vector<1x32x128xf32>
    %37 = vector.broadcast %36 : vector<1x32x128xf32> to vector<4x32x128xf32>
    %38 = arith.mulf %14, %37 : vector<4x32x128xf32>
    %39 = vector.broadcast %36 : vector<1x32x128xf32> to vector<4x32x128xf32>
    %40 = arith.mulf %22, %39 : vector<4x32x128xf32>
    %c0_9 = arith.constant 0 : index
    %c0_10 = arith.constant 0 : index
    %c0_11 = arith.constant 0 : index
    %41 = vector.load %arg7[%c0_9, %c0_10, %c0_11] : memref<4x4x128xf32, #tpu.memory_space<vmem>>, vector<1x4x128xf32>
    %42 = vector.shape_cast %41 : vector<1x4x128xf32> to vector<4x128xf32>
    %43 = arith.mulf %40, %38 : vector<4x32x128xf32>
    %cst_12 = arith.constant dense<0.000000e+00> : vector<4x128xf32>
    %44 = vector.multi_reduction <add>, %43, %cst_12 [1] : vector<4x32x128xf32> to vector<4x128xf32>
    %45 = arith.addf %42, %44 : vector<4x128xf32>
    %c0_13 = arith.constant 0 : index
    %c0_14 = arith.constant 0 : index
    %c0_15 = arith.constant 0 : index
    %46 = vector.load %arg7[%c0_13, %c0_14, %c0_15] : memref<4x4x128xf32, #tpu.memory_space<vmem>>, vector<1x4x128xf32>
    %47 = vector.shape_cast %46 : vector<1x4x128xf32> to vector<4x128xf32>
    %48 = vector.shape_cast %45 : vector<4x128xf32> to vector<1x4x128xf32>
    tpu.vector_store %arg7[%c0_13, %c0_14, %c0_15], %48 {strides = array<i32>} : memref<4x4x128xf32, #tpu.memory_space<vmem>>, vector<1x4x128xf32>,
    %c1 = arith.constant 1 : index
    %c0_16 = arith.constant 0 : index
    %c0_17 = arith.constant 0 : index
    %49 = vector.load %arg7[%c1, %c0_16, %c0_17] : memref<4x4x128xf32, #tpu.memory_space<vmem>>, vector<1x4x128xf32>
    %50 = vector.shape_cast %49 : vector<1x4x128xf32> to vector<4x128xf32>
    %cst_18 = arith.constant dense<0.000000e+00> : vector<4x128xf32>
    %51 = vector.multi_reduction <add>, %38, %cst_18 [1] : vector<4x32x128xf32> to vector<4x128xf32>
    %52 = arith.addf %50, %51 : vector<4x128xf32>
    %c1_19 = arith.constant 1 : index
    %c0_20 = arith.constant 0 : index
    %c0_21 = arith.constant 0 : index
    %53 = vector.load %arg7[%c1_19, %c0_20, %c0_21] : memref<4x4x128xf32, #tpu.memory_space<vmem>>, vector<1x4x128xf32>
    %54 = vector.shape_cast %53 : vector<1x4x128xf32> to vector<4x128xf32>
    %55 = vector.shape_cast %52 : vector<4x128xf32> to vector<1x4x128xf32>
    tpu.vector_store %arg7[%c1_19, %c0_20, %c0_21], %55 {strides = array<i32>} : memref<4x4x128xf32, #tpu.memory_space<vmem>>, vector<1x4x128xf32>,
    %c2 = arith.constant 2 : index
    %c0_22 = arith.constant 0 : index
    %c0_23 = arith.constant 0 : index
    %56 = vector.load %arg7[%c2, %c0_22, %c0_23] : memref<4x4x128xf32, #tpu.memory_space<vmem>>, vector<1x4x128xf32>
    %57 = vector.shape_cast %56 : vector<1x4x128xf32> to vector<4x128xf32>
    %cst_24 = arith.constant dense<0.000000e+00> : vector<4x128xf32>
    %58 = vector.multi_reduction <add>, %40, %cst_24 [1] : vector<4x32x128xf32> to vector<4x128xf32>
    %59 = arith.addf %57, %58 : vector<4x128xf32>
    %c2_25 = arith.constant 2 : index
    %c0_26 = arith.constant 0 : index
    %c0_27 = arith.constant 0 : index
    %60 = vector.load %arg7[%c2_25, %c0_26, %c0_27] : memref<4x4x128xf32, #tpu.memory_space<vmem>>, vector<1x4x128xf32>
    %61 = vector.shape_cast %60 : vector<1x4x128xf32> to vector<4x128xf32>
    %62 = vector.shape_cast %59 : vector<4x128xf32> to vector<1x4x128xf32>
    tpu.vector_store %arg7[%c2_25, %c0_26, %c0_27], %62 {strides = array<i32>} : memref<4x4x128xf32, #tpu.memory_space<vmem>>, vector<1x4x128xf32>,
    %c0_28 = arith.constant 0 : index
    %c1_29 = arith.constant 1 : index
    %c0_30 = arith.constant 0 : index
    %c0_31 = arith.constant 0 : index
    %63 = vector.load %arg5[%c0_28, %c1_29, %c0_30, %c0_31] : memref<1x4x32x128xf32, #tpu.memory_space<vmem>>, vector<1x3x32x128xf32>
    %64 = vector.shape_cast %63 : vector<1x3x32x128xf32> to vector<3x32x128xf32>
    %c3 = arith.constant 3 : index
    %c1_32 = arith.constant 1 : index
    %c0_33 = arith.constant 0 : index
    %65 = vector.load %arg7[%c3, %c1_32, %c0_33] : memref<4x4x128xf32, #tpu.memory_space<vmem>>, vector<1x3x128xf32>
    %66 = vector.shape_cast %65 : vector<1x3x128xf32> to vector<3x128xf32>
    %67 = vector.extract_strided_slice %38 {offsets = [1, 0, 0], sizes = [3, 32, 128], strides = [1, 1, 1]} : vector<4x32x128xf32> to vector<3x32x128xf32>
    %68 = arith.mulf %67, %64 : vector<3x32x128xf32>
    %cst_34 = arith.constant dense<0.000000e+00> : vector<3x128xf32>
    %69 = vector.multi_reduction <add>, %68, %cst_34 [1] : vector<3x32x128xf32> to vector<3x128xf32>
    %70 = arith.addf %66, %69 : vector<3x128xf32>
    %c3_35 = arith.constant 3 : index
    %c1_36 = arith.constant 1 : index
    %c0_37 = arith.constant 0 : index
    %71 = vector.load %arg7[%c3_35, %c1_36, %c0_37] : memref<4x4x128xf32, #tpu.memory_space<vmem>>, vector<1x3x128xf32>
    %72 = vector.shape_cast %71 : vector<1x3x128xf32> to vector<3x128xf32>
    %73 = vector.shape_cast %70 : vector<3x128xf32> to vector<1x3x128xf32>
    tpu.vector_store %arg7[%c3_35, %c1_36, %c0_37], %73 {strides = array<i32>} : memref<4x4x128xf32, #tpu.memory_space<vmem>>, vector<1x3x128xf32>,
    %c0_i32_38 = arith.constant 0 : i32
    %74 = arith.cmpi eq, %arg2, %c0_i32_38 : i32
    %75 = arith.extui %74 : i1 to i32
    %c0_i32_39 = arith.constant 0 : i32
    %76 = arith.cmpi ne, %75, %c0_i32_39 : i32
    scf.if %76 {
      %c0_40 = arith.constant 0 : index
      %c0_41 = arith.constant 0 : index
      %c0_42 = arith.constant 0 : index
      %77 = vector.load %arg7[%c0_40, %c0_41, %c0_42] : memref<4x4x128xf32, #tpu.memory_space<vmem>>, vector<4x4x128xf32>
      %c0_43 = arith.constant 0 : index
      %c0_44 = arith.constant 0 : index
      %c0_45 = arith.constant 0 : index
      %c0_46 = arith.constant 0 : index
      %c0_47 = arith.constant 0 : index
      %78 = vector.load %arg6[%c0_43, %c0_44, %c0_45, %c0_46, %c0_47] : memref<1x1x4x4x128xf32, #tpu.memory_space<vmem>>, vector<1x1x4x4x128xf32>
      %79 = vector.shape_cast %78 : vector<1x1x4x4x128xf32> to vector<4x4x128xf32>
      %80 = vector.shape_cast %77 : vector<4x4x128xf32> to vector<1x1x4x4x128xf32>
      tpu.vector_store %arg6[%c0_43, %c0_44, %c0_45, %c0_46, %c0_47], %80 {strides = array<i32>} : memref<1x1x4x4x128xf32, #tpu.memory_space<vmem>>, vector<1x1x4x4x128xf32>,
    } else {
    }
    return
  }
  func.func @transform_0(%arg0: i32, %arg1: i32, %arg2: i32) -> (i32, i32, i32, i32) {
    %c1_i32 = arith.constant 1 : i32
    %0 = arith.muli %arg1, %c1_i32 : i32
    %1 = arith.addi %0, %arg2 : i32
    %c0_i32 = arith.constant 0 : i32
    %c0_i32_0 = arith.constant 0 : i32
    %c0_i32_1 = arith.constant 0 : i32
    return %arg0, %c0_i32, %1, %c0_i32_0 : i32, i32, i32, i32
  }
  func.func @transform_1(%arg0: i32, %arg1: i32, %arg2: i32) -> (i32, i32, i32, i32) {
    %c1_i32 = arith.constant 1 : i32
    %0 = arith.muli %arg1, %c1_i32 : i32
    %1 = arith.addi %0, %arg2 : i32
    %c0_i32 = arith.constant 0 : i32
    %c0_i32_0 = arith.constant 0 : i32
    %c0_i32_1 = arith.constant 0 : i32
    return %arg0, %c0_i32, %1, %c0_i32_0 : i32, i32, i32, i32
  }
  func.func @transform_2(%arg0: i32, %arg1: i32, %arg2: i32) -> (i32, i32, i32, i32) {
    %c1_i32 = arith.constant 1 : i32
    %0 = arith.muli %arg1, %c1_i32 : i32
    %1 = arith.addi %0, %arg2 : i32
    %c0_i32 = arith.constant 0 : i32
    %c0_i32_0 = arith.constant 0 : i32
    %c0_i32_1 = arith.constant 0 : i32
    return %arg0, %c0_i32, %1, %c0_i32_0 : i32, i32, i32, i32
  }
  func.func @transform_3(%arg0: i32, %arg1: i32, %arg2: i32) -> (i32, i32, i32, i32, i32) {
    %c0_i32 = arith.constant 0 : i32
    %c0_i32_0 = arith.constant 0 : i32
    %c0_i32_1 = arith.constant 0 : i32
    %c0_i32_2 = arith.constant 0 : i32
    return %arg0, %arg1, %c0_i32, %c0_i32_0, %c0_i32_1 : i32, i32, i32, i32, i32
  }
}

</mosaic_0001>

<llo_original>
// kernel: tpu_custom_call.1
$region0: #{tpu_custom_call.1}
  #allocation0 [shape = 'u32[]', space=smem, size = 0x4, offset = 0x4, fixed_abs, tag = 'smem constant byte address 0x4 - core index']
  #allocation1 [shape = 'u32[144,128]{1,0:T(1,128)}', space=vmem, size = 0x12000, scoped, tag = 'internal scratch']
  #allocation2 [shape = 'f32[4,4,128]{2,1,0:T(4,128)}', space=vmem, size = 0x2000, scoped, tag = 'scratch operand']
  %s0 = inlined_call_operand.hbm [shape: f32[2,4,32,128], index: 0, kind: input, shape index: {}]
  %s1 = inlined_call_operand.hbm [shape: s8[2,1,32,128], index: 1, kind: input, shape index: {}]
  %s2 = inlined_call_operand.hbm [shape: f32[2,4,32,128], index: 2, kind: input, shape index: {}]
  %s3 = inlined_call_operand.hbm [shape: f32[2,1,4,4,128], index: 3, kind: output, shape index: {}]
  %s4 = sld [smem:[#allocation0]]
  $region65: #{tpu_custom_call.1} parent=0
    _
  %s6 = ssub.s32 1, %s4
  %s7 = scalar_select 0, %s6, %s4
  $region1: #{tpu_custom_call.1} parent=0
    #allocation3 [shape = 'u8[131072]{0}', space=vmem, size = 0x20000, scoped, tag = 'input window, operand 0']
    #allocation4 [shape = 's32[2]{0}', space=sflag, size = 0x8, scoped, tag = 'scoped memory for tpu_custom_call.1']
    #allocation5 [shape = 's32[2]{0}', space=sflag, size = 0x8, scoped, tag = 'scoped memory for tpu_custom_call.1']
    #allocation6 [shape = 'u8[8192]{0}', space=vmem, size = 0x2000, scoped, tag = 'input window, operand 1']
    #allocation7 [shape = 's32[2]{0}', space=sflag, size = 0x8, scoped, tag = 'scoped memory for tpu_custom_call.1']
    #allocation8 [shape = 'u8[131072]{0}', space=vmem, size = 0x20000, scoped, tag = 'input window, operand 2']
    #allocation9 [shape = 'u8[16384]{0}', space=vmem, size = 0x4000, scoped, tag = 'output window, operand 0']
    %8 = vsyncpa [#allocation4], 0
    %s9 = scalar_lea.sflag [#allocation4], 1
    %10 = vsyncpa %s9, 0
    %11 = vsyncpa [#allocation7], 0
    %s12 = scalar_lea.sflag [#allocation7], 1
    %13 = vsyncpa %s12, 0
    %14 = vsyncpa [#allocation5], 0
    %s15 = scalar_lea.sflag [#allocation5], 1
    %16 = vsyncpa %s15, 0
    loop: start=0, step=1, limit=4
    $region2: #{tpu_custom_call.1} parent=1 // loop_pre_header
      _
    $region3: #{tpu_custom_call.1} parent=1 // loop_header
      %s18 = sphi 0, %s22
      %p19 = scmp.ge.s32.totalorder %s18, 4
      %s25 = sphi 0, %s44
      %s26 = sphi 0, %s40
      %s27 = sphi 0, %s36
      %s28 = sphi 0, %s25
      %s29 = sphi 0, %s26
      %s30 = sphi 0, %s27
      %s31 = sphi 0, %s28
      %s32 = sphi 0, %s29
      %s33 = sphi 0, %s30
      %s51 = sphi 0, %s53
      %s54 = sphi 0, %s51
      %s55 = sphi 0, %s54
      %s71 = sphi 0, %s55
      %s81 = sphi 0, %s83
      %s84 = sphi 0, %s81
      %s85 = sphi 0, %s84
      %s101 = sphi 0, %s85
      %s111 = sphi 0, %s113
      %s114 = sphi 0, %s111
      %s115 = sphi 0, %s114
      %s131 = sphi 0, %s115
      %s139 = sphi 0, %s141
      %s142 = sphi 0, %s139
      %s143 = sphi 0, %s142
      %s159 = sphi 0, %s143
    $region4: #{tpu_custom_call.1} parent=1 // loop_header_branch
      %21 = sbr.rel (%p19) target = $region8
    $region5: #{tpu_custom_call.1} parent=1 // loop_body
      %s23 = ssub.s32 %s18, 1
      %s24 = ssub.s32 %s18, 2
      %s34 = sadd.s32 1, %s27
      %p35 = scmp.ge.s32.totalorder %s34, 1
      %s36 = scalar_select %p35, 0, %s34
      %s37 = sadd.s32 1, %s26
      %s38 = scalar_select %p35, %s37, %s26
      %p39 = scmp.ge.s32.totalorder %s38, 1
      %s40 = scalar_select %p39, 0, %s38
      %s41 = sadd.s32 1, %s25
      %s42 = scalar_select %p39, %s41, %s25
      %p43 = scmp.ge.s32.totalorder %s42, 2
      %s44 = scalar_select %p43, 0, %s42
      %s45 = sadd.s32 %s26, %s27
      %s46 = sadd.s32 %s40, %s36
      %s47 = ssub.s32 %s25, %s44
      %s48 = ssub.s32 %s45, %s46
      %s49 = sor.u32 %s47, %s48
      %p50 = scmp.eq.s32.totalorder %s49, 0
      %s52 = sadd.s32 %s51, 1
      %s53 = scalar_select %p50, %s51, %s52
      %p56 = pneg %p50
      %p57 = scmp.eq.s32.totalorder %s18, 1
      %p58 = por %p56, %p57
      %p59 = scmp.ne.s32.totalorder %s51, %s54
      %p60 = scmp.eq.s32.totalorder %s18, 0
      %p61 = por %p59, %p60
      %p62 = scmp.ne.s32.totalorder %s51, %s54
      %p63 = scmp.eq.s32.totalorder %s23, 1
      %p64 = por %p62, %p63
      %p65 = scmp.ne.s32.totalorder %s54, %s55
      %p66 = scmp.eq.s32.totalorder %s23, 0
      %p67 = por %p65, %p66
      %p68 = scmp.ne.s32.totalorder %s54, %s55
      %p69 = scmp.eq.s32.totalorder %s24, 1
      %p70 = por %p68, %p69
      %p72 = scmp.ne.s32.totalorder %s55, %s71
      %p73 = scmp.eq.s32.totalorder %s24, 0
      %p74 = por %p72, %p73
      %s75 = sadd.s32 %s26, %s27
      %s76 = sadd.s32 %s40, %s36
      %s77 = ssub.s32 %s25, %s44
      %s78 = ssub.s32 %s75, %s76
      %s79 = sor.u32 %s77, %s78
      %p80 = scmp.eq.s32.totalorder %s79, 0
      %s82 = sadd.s32 %s81, 1
      %s83 = scalar_select %p80, %s81, %s82
      %p86 = pneg %p80
      %p87 = scmp.eq.s32.totalorder %s18, 1
      %p88 = por %p86, %p87
      %p89 = scmp.ne.s32.totalorder %s81, %s84
      %p90 = scmp.eq.s32.totalorder %s18, 0
      %p91 = por %p89, %p90
      %p92 = scmp.ne.s32.totalorder %s81, %s84
      %p93 = scmp.eq.s32.totalorder %s23, 1
      %p94 = por %p92, %p93
      %p95 = scmp.ne.s32.totalorder %s84, %s85
      %p96 = scmp.eq.s32.totalorder %s23, 0
      %p97 = por %p95, %p96
      %p98 = scmp.ne.s32.totalorder %s84, %s85
      %p99 = scmp.eq.s32.totalorder %s24, 1
      %p100 = por %p98, %p99
      %p102 = scmp.ne.s32.totalorder %s85, %s101
      %p103 = scmp.eq.s32.totalorder %s24, 0
      %p104 = por %p102, %p103
      %s105 = sadd.s32 %s26, %s27
      %s106 = sadd.s32 %s40, %s36
      %s107 = ssub.s32 %s25, %s44
      %s108 = ssub.s32 %s105, %s106
      %s109 = sor.u32 %s107, %s108
      %p110 = scmp.eq.s32.totalorder %s109, 0
      %s112 = sadd.s32 %s111, 1
      %s113 = scalar_select %p110, %s111, %s112
      %p116 = pneg %p110
      %p117 = scmp.eq.s32.totalorder %s18, 1
      %p118 = por %p116, %p117
      %p119 = scmp.ne.s32.totalorder %s111, %s114
      %p120 = scmp.eq.s32.totalorder %s18, 0
      %p121 = por %p119, %p120
      %p122 = scmp.ne.s32.totalorder %s111, %s114
      %p123 = scmp.eq.s32.totalorder %s23, 1
      %p124 = por %p122, %p123
      %p125 = scmp.ne.s32.totalorder %s114, %s115
      %p126 = scmp.eq.s32.totalorder %s23, 0
      %p127 = por %p125, %p126
      %p128 = scmp.ne.s32.totalorder %s114, %s115
      %p129 = scmp.eq.s32.totalorder %s24, 1
      %p130 = por %p128, %p129
      %p132 = scmp.ne.s32.totalorder %s115, %s131
      %p133 = scmp.eq.s32.totalorder %s24, 0
      %p134 = por %p132, %p133
      %s135 = ssub.s32 %s25, %s44
      %s136 = ssub.s32 %s26, %s40
      %s137 = sor.u32 %s135, %s136
      %p138 = scmp.eq.s32.totalorder %s137, 0
      %s140 = sadd.s32 %s139, 1
      %s141 = scalar_select %p138, %s139, %s140
      %p144 = pneg %p138
      %p145 = scmp.eq.s32.totalorder %s18, 1
      %p146 = por %p144, %p145
      %p147 = scmp.ne.s32.totalorder %s139, %s142
      %p148 = scmp.eq.s32.totalorder %s18, 0
      %p149 = por %p147, %p148
      %p150 = scmp.ne.s32.totalorder %s139, %s142
      %p151 = scmp.eq.s32.totalorder %s23, 1
      %p152 = por %p150, %p151
      %p153 = scmp.ne.s32.totalorder %s142, %s143
      %p154 = scmp.eq.s32.totalorder %s23, 0
      %p155 = por %p153, %p154
      %p156 = scmp.ne.s32.totalorder %s142, %s143
      %p157 = scmp.eq.s32.totalorder %s24, 1
      %p158 = por %p156, %p157
      %p160 = scmp.ne.s32.totalorder %s143, %s159
      %p161 = scmp.eq.s32.totalorder %s24, 0
      %p162 = por %p160, %p161
      %p163 = scmp.le.s32.totalorder 1, %s18
      %p164 = scmp.lt.s32.totalorder %s18, 3
      %p165 = pnand %p163, %p164
      %p166 = pneg %p165
      // Predicated region
      $region9: #{tpu_custom_call.1} parent=5 // pred_check
        _
      $region10: #{tpu_custom_call.1} parent=5 // pred_check_branch
        %168 = sbr.rel (%p165) target = $region12
      $region11: #{tpu_custom_call.1} parent=5 // pred_region
        %s169 = ssub.s32 %s18, 1
      $region12: #{tpu_custom_call.1} parent=5 // pred_fallthru
        _
      %p170 = scmp.lt.s32.totalorder %s18, 2
      // Predicated region
      $region13: #{tpu_custom_call.1} parent=5 // pred_check
        %p171 = pneg %p170
      $region14: #{tpu_custom_call.1} parent=5 // pred_check_branch
        %173 = sbr.rel (%p171) target = $region16
      $region15: #{tpu_custom_call.1} parent=5 // pred_region
        // Predicated region
        $region17: #{tpu_custom_call.1} parent=15 // pred_check
          %p174 = pneg %p61
        $region18: #{tpu_custom_call.1} parent=15 // pred_check_branch
          %176 = sbr.rel (%p174) target = $region20
        $region19: #{tpu_custom_call.1} parent=15 // pred_region
          %s177 = sand.u32 %s51, 1
          %s178 = scalar_lea.sflag [#allocation4], %s177
          %s179 = sand.u32 %s51, 1
          %s180 = smul.addr %s179, 128
          %s181 = scalar_lea.vmem [#allocation3], %s180
          %s182 = sadd.s32 %s26, %s27
          %s183 = smul.u32 4, %s182
          %s185 = ssub.s32 2048, 2048
          %186 = vsyncadd %s178, %s185
          %s187 = smul.addr %s25, 16
          %s188 = sadd.s32 %s183, %s187
          %s189 = smul.addr %s188, 128
          %s190 = scalar_lea.hbm %s0, %s189
          %s191 = sshll.u32 %s181, 4
          %s192 = int_to_ptr.vmem [resolvable:$true] %s191
          %197 = dma.hbm_to_vmem [thread:$0]  %s190, 2048, %s192, %s178, 128, 128, 8
        $region20: #{tpu_custom_call.1} parent=15 // pred_fallthru
          _
        // Predicated region
        $region21: #{tpu_custom_call.1} parent=15 // pred_check
          %p198 = pneg %p91
        $region22: #{tpu_custom_call.1} parent=15 // pred_check_branch
          %200 = sbr.rel (%p198) target = $region24
        $region23: #{tpu_custom_call.1} parent=15 // pred_region
          %s201 = sand.u32 %s18, 1
          %s202 = scalar_lea.sflag [#allocation7], %s201
          %s203 = sand.u32 %s81, 1
          %s204 = smul.addr %s203, 8
          %s205 = scalar_lea.vmem [#allocation6], %s204
          %s206 = sadd.s32 %s26, %s27
          %s208 = ssub.s32 128, 128
          %209 = vsyncadd %s202, %s208
          %s210 = sadd.s32 %s206, %s25
          %s211 = smul.addr %s210, 128
          %s212 = scalar_lea.hbm %s1, %s211
          %s214 = sshll.u32 %s205, 4
          %s215 = int_to_ptr.vmem [resolvable:$true] %s214
          %217 = dma.hbm_to_vmem [thread:$0]  %s212, 128, %s215, %s202
        $region24: #{tpu_custom_call.1} parent=15 // pred_fallthru
          _
        // Predicated region
        $region25: #{tpu_custom_call.1} parent=15 // pred_check
          %p218 = pneg %p121
        $region26: #{tpu_custom_call.1} parent=15 // pred_check_branch
          %220 = sbr.rel (%p218) target = $region28
        $region27: #{tpu_custom_call.1} parent=15 // pred_region
          %s221 = sand.u32 %s18, 1
          %s222 = scalar_lea.sflag [#allocation7], %s221
          %s223 = sand.u32 %s111, 1
          %s224 = smul.addr %s223, 128
          %s225 = scalar_lea.vmem [#allocation8], %s224
          %s226 = sadd.s32 %s26, %s27
          %s227 = smul.u32 4, %s226
          %s229 = ssub.s32 2048, 2048
          %230 = vsyncadd %s222, %s229
          %s231 = smul.addr %s25, 16
          %s232 = sadd.s32 %s227, %s231
          %s233 = smul.addr %s232, 128
          %s234 = scalar_lea.hbm %s2, %s233
          %s235 = sshll.u32 %s225, 4
          %s236 = int_to_ptr.vmem [resolvable:$true] %s235
          %241 = dma.hbm_to_vmem [thread:$0]  %s234, 2048, %s236, %s222, 128, 128, 8
        $region28: #{tpu_custom_call.1} parent=15 // pred_fallthru
          _
      $region16: #{tpu_custom_call.1} parent=5 // pred_fallthru
        _
      %p242 = scmp.le.s32.totalorder 1, %s18
      %p243 = scmp.lt.s32.totalorder %s18, 3
      %p244 = pnand %p242, %p243
      %p245 = pneg %p244
      // Predicated region
      $region29: #{tpu_custom_call.1} parent=5 // pred_check
        _
      $region30: #{tpu_custom_call.1} parent=5 // pred_check_branch
        %247 = sbr.rel (%p244) target = $region32
      $region31: #{tpu_custom_call.1} parent=5 // pred_region
        %s248 = ssub.s32 %s18, 1
        %s249 = sand.u32 %s54, 1
        %s250 = scalar_lea.sflag [#allocation4], %s249
        %s251 = sand.u32 %s54, 1
        %s252 = smul.addr %s251, 128
        %s253 = scalar_lea.vmem [#allocation3], %s252
        // Predicated region
        $region33: #{tpu_custom_call.1} parent=31 // pred_check
          %p254 = pneg %p67
        $region34: #{tpu_custom_call.1} parent=31 // pred_check_branch
          %256 = sbr.rel (%p254) target = $region36
        $region35: #{tpu_custom_call.1} parent=31 // pred_region
          %257 = dma.done %s250, 2048
        $region36: #{tpu_custom_call.1} parent=31 // pred_fallthru
          _
        %s258 = sand.u32 %s23, 1
        %s259 = scalar_lea.sflag [#allocation7], %s258
        %s260 = sand.u32 %s84, 1
        %s261 = smul.addr %s260, 8
        %s262 = scalar_lea.vmem [#allocation6], %s261
        // Predicated region
        $region37: #{tpu_custom_call.1} parent=31 // pred_check
          %p263 = pneg %p97
        $region38: #{tpu_custom_call.1} parent=31 // pred_check_branch
          %265 = sbr.rel (%p263) target = $region40
        $region39: #{tpu_custom_call.1} parent=31 // pred_region
          %266 = dma.done %s259, 128
        $region40: #{tpu_custom_call.1} parent=31 // pred_fallthru
          _
        %s267 = sand.u32 %s23, 1
        %s268 = scalar_lea.sflag [#allocation7], %s267
        %s269 = sand.u32 %s114, 1
        %s270 = smul.addr %s269, 128
        %s271 = scalar_lea.vmem [#allocation8], %s270
        // Predicated region
        $region41: #{tpu_custom_call.1} parent=31 // pred_check
          %p272 = pneg %p127
        $region42: #{tpu_custom_call.1} parent=31 // pred_check_branch
          %274 = sbr.rel (%p272) target = $region44
        $region43: #{tpu_custom_call.1} parent=31 // pred_region
          %275 = dma.done %s268, 2048
        $region44: #{tpu_custom_call.1} parent=31 // pred_fallthru
          _
        %s276 = sand.u32 %s54, 1
        %s277 = scalar_lea.sflag [#allocation4], %s276
        %s278 = sand.u32 %s54, 1
        %s279 = smul.addr %s278, 128
        %s280 = scalar_lea.vmem [#allocation3], %s279
        %p281 = pneg %p67
        %p282 = pneg %p64
        %s283 = sand.u32 %s23, 1
        %s284 = scalar_lea.sflag [#allocation7], %s283
        %s285 = sand.u32 %s84, 1
        %s286 = smul.addr %s285, 8
        %s287 = scalar_lea.vmem [#allocation6], %s286
        %p288 = pneg %p97
        %p289 = pneg %p94
        %s290 = sand.u32 %s23, 1
        %s291 = scalar_lea.sflag [#allocation7], %s290
        %s292 = sand.u32 %s114, 1
        %s293 = smul.addr %s292, 128
        %s294 = scalar_lea.vmem [#allocation8], %s293
        %p295 = pneg %p127
        %p296 = pneg %p124
        %p297 = pneg %p155
        %p298 = pneg %p152
        %s299 = sand.u32 %s142, 1
        %s300 = scalar_lea.sflag [#allocation5], %s299
        %s301 = sand.u32 %s142, 1
        %s302 = smul.addr %s301, 16
        %s303 = scalar_lea.vmem [#allocation9], %s302
        %s304 = sadd.s32 %s29, %s30
        %s305 = smul.u32 4, %s304
        %s306 = sadd.s32 %s29, %s30
        %s307 = sadd.s32 %s29, %s30
        %s308 = smul.u32 4, %s307
        %p309 = scmp.eq.s32.totalorder %s30, 0
        // Predicated region
        $region45: #{tpu_custom_call.1} parent=31 // pred_check
          %p310 = pneg %p309
        $region46: #{tpu_custom_call.1} parent=31 // pred_check_branch
          %312 = sbr.rel (%p310) target = $region48
        $region47: #{tpu_custom_call.1} parent=31 // pred_region
          %313 = vst [vmem:[#allocation2] sm:$0xf] 0.0
          %314 = vst [vmem:[#allocation2 + $0x4] sm:$0xf] 0.0
          %315 = vst [vmem:[#allocation2 + $0x8] sm:$0xf] 0.0
          %316 = vst [vmem:[#allocation2 + $0xc] sm:$0xf] 0.0
        $region48: #{tpu_custom_call.1} parent=31 // pred_fallthru
          _
        %v317 = vld [vmem:[%s253] sm:$0xff]
        %v318 = vld [vmem:[%s253 + $0x8] sm:$0xff]
        %v319 = vld [vmem:[%s253 + $0x10] sm:$0xff]
        %v320 = vld [vmem:[%s253 + $0x18] sm:$0xff]
        %v321 = vld [vmem:[%s253 + $0x20] sm:$0xff]
        %v322 = vld [vmem:[%s253 + $0x28] sm:$0xff]
        %v323 = vld [vmem:[%s253 + $0x30] sm:$0xff]
        %v324 = vld [vmem:[%s253 + $0x38] sm:$0xff]
        %v325 = vld [vmem:[%s253 + $0x40] sm:$0xff]
        %v326 = vld [vmem:[%s253 + $0x48] sm:$0xff]
        %v327 = vld [vmem:[%s253 + $0x50] sm:$0xff]
        %v328 = vld [vmem:[%s253 + $0x58] sm:$0xff]
        %v329 = vld [vmem:[%s253 + $0x60] sm:$0xff]
        %v330 = vld [vmem:[%s253 + $0x68] sm:$0xff]
        %v331 = vld [vmem:[%s253 + $0x70] sm:$0xff]
        %v332 = vld [vmem:[%s253 + $0x78] sm:$0xff]
        %v333 = vmax.f32 %v317, %v321
        %v334 = vmax.f32 %v333, %v325
        %v335 = vmax.f32 %v334, %v329
        %v336 = vmax.f32 %v318, %v322
        %v337 = vmax.f32 %v336, %v326
        %v338 = vmax.f32 %v337, %v330
        %v339 = vmax.f32 %v319, %v323
        %v340 = vmax.f32 %v339, %v327
        %v341 = vmax.f32 %v340, %v331
        %v342 = vmax.f32 %v320, %v324
        %v343 = vmax.f32 %v342, %v328
        %v344 = vmax.f32 %v343, %v332
        %v345 = vsub.f32 %v317, %v335
        %v346 = vsub.f32 %v318, %v338
        %v347 = vsub.f32 %v319, %v341
        %v348 = vsub.f32 %v320, %v344
        %v349 = vsub.f32 %v321, %v335
        %v350 = vsub.f32 %v322, %v338
        %v351 = vsub.f32 %v323, %v341
        %v352 = vsub.f32 %v324, %v344
        %v353 = vsub.f32 %v325, %v335
        %v354 = vsub.f32 %v326, %v338
        %v355 = vsub.f32 %v327, %v341
        %v356 = vsub.f32 %v328, %v344
        %v357 = vsub.f32 %v329, %v335
        %v358 = vsub.f32 %v330, %v338
        %v359 = vsub.f32 %v331, %v341
        %v360 = vsub.f32 %v332, %v344
        %v361 = vmul.f32 %v345, 1.442695
        %v362 = vpow.pop %v361
        %v363 = vmul.f32 %v346, 1.442695
        %v364 = vpow.pop %v363
        %v365 = vmul.f32 %v347, 1.442695
        %v366 = vpow.pop %v365
        %v367 = vmul.f32 %v348, 1.442695
        %v368 = vpow.pop %v367
        %v369 = vmul.f32 %v349, 1.442695
        %v370 = vpow.pop %v369
        %v371 = vmul.f32 %v350, 1.442695
        %v372 = vpow.pop %v371
        %v373 = vmul.f32 %v351, 1.442695
        %v374 = vpow.pop %v373
        %v375 = vmul.f32 %v352, 1.442695
        %v376 = vpow.pop %v375
        %v377 = vmul.f32 %v353, 1.442695
        %v378 = vpow.pop %v377
        %v379 = vmul.f32 %v354, 1.442695
        %v380 = vpow.pop %v379
        %v381 = vmul.f32 %v355, 1.442695
        %v382 = vpow.pop %v381
        %v383 = vmul.f32 %v356, 1.442695
        %v384 = vpow.pop %v383
        %v385 = vmul.f32 %v357, 1.442695
        %v386 = vpow.pop %v385
        %v387 = vmul.f32 %v358, 1.442695
        %v388 = vpow.pop %v387
        %v389 = vmul.f32 %v359, 1.442695
        %v390 = vpow.pop %v389
        %v391 = vmul.f32 %v360, 1.442695
        %v392 = vpow.pop %v391
        %v393 = vadd.f32 %v362, %v370
        %v394 = vadd.f32 %v393, %v378
        %v395 = vadd.f32 %v394, %v386
        %v396 = vadd.f32 %v364, %v372
        %v397 = vadd.f32 %v396, %v380
        %v398 = vadd.f32 %v397, %v388
        %v399 = vadd.f32 %v366, %v374
        %v400 = vadd.f32 %v399, %v382
        %v401 = vadd.f32 %v400, %v390
        %v402 = vadd.f32 %v368, %v376
        %v403 = vadd.f32 %v402, %v384
        %v404 = vadd.f32 %v403, %v392
        %v405 = vrcp.pop %v395
        %v406 = vrcp.pop %v398
        %v407 = vrcp.pop %v401
        %v408 = vrcp.pop %v404
        %v409 = vmul.f32 %v362, %v405
        %v410 = vmul.f32 %v364, %v406
        %v411 = vmul.f32 %v366, %v407
        %v412 = vmul.f32 %v368, %v408
        %v413 = vmul.f32 %v370, %v405
        %v414 = vmul.f32 %v372, %v406
        %v415 = vmul.f32 %v374, %v407
        %v416 = vmul.f32 %v376, %v408
        %v417 = vmul.f32 %v378, %v405
        %v418 = vmul.f32 %v380, %v406
        %v419 = vmul.f32 %v382, %v407
        %v420 = vmul.f32 %v384, %v408
        %v421 = vmul.f32 %v386, %v405
        %v422 = vmul.f32 %v388, %v406
        %v423 = vmul.f32 %v390, %v407
        %v424 = vmul.f32 %v392, %v408
        %v425 = vld [vmem:[%s262] sm:$0xff]
        %v426 = vunpack.c.0.s8 %v425
        %v427 = vunpack.c.1.s8 %v425
        %v428 = vunpack.c.2.s8 %v425
        %v429 = vunpack.c.3.s8 %v425
        %vm430 = vcmp.eq.s32.totalorder %v426, 0
        %vm431 = vcmp.eq.s32.totalorder %v427, 0
        %vm432 = vcmp.eq.s32.totalorder %v428, 0
        %vm433 = vcmp.eq.s32.totalorder %v429, 0
        %vm434 = vcmp.eq.s32.totalorder %v426, 1
        %vm435 = vcmp.eq.s32.totalorder %v427, 1
        %vm436 = vcmp.eq.s32.totalorder %v428, 1
        %vm437 = vcmp.eq.s32.totalorder %v429, 1
        %vm438 = vcmp.eq.s32.totalorder %v426, 2
        %vm439 = vcmp.eq.s32.totalorder %v427, 2
        %vm440 = vcmp.eq.s32.totalorder %v428, 2
        %vm441 = vcmp.eq.s32.totalorder %v429, 2
        %vm442 = vcmp.eq.s32.totalorder %v426, 3
        %vm443 = vcmp.eq.s32.totalorder %v427, 3
        %vm444 = vcmp.eq.s32.totalorder %v428, 3
        %vm445 = vcmp.eq.s32.totalorder %v429, 3
        %v446 = vsel %vm430, 1, 0
        %v447 = vsel %vm431, 1, 0
        %v448 = vsel %vm432, 1, 0
        %v449 = vsel %vm433, 1, 0
        %v450 = vsel %vm434, 1, 0
        %v451 = vsel %vm435, 1, 0
        %v452 = vsel %vm436, 1, 0
        %v453 = vsel %vm437, 1, 0
        %v454 = vsel %vm438, 1, 0
        %v455 = vsel %vm439, 1, 0
        %v456 = vsel %vm440, 1, 0
        %v457 = vsel %vm441, 1, 0
        %v458 = vsel %vm442, 1, 0
        %v459 = vsel %vm443, 1, 0
        %v460 = vsel %vm444, 1, 0
        %v461 = vsel %vm445, 1, 0
        %v462 = vcvt.s32.f32 %v446
        %v463 = vcvt.s32.f32 %v447
        %v464 = vcvt.s32.f32 %v448
        %v465 = vcvt.s32.f32 %v449
        %v466 = vcvt.s32.f32 %v450
        %v467 = vcvt.s32.f32 %v451
        %v468 = vcvt.s32.f32 %v452
        %v469 = vcvt.s32.f32 %v453
        %v470 = vcvt.s32.f32 %v454
        %v471 = vcvt.s32.f32 %v455
        %v472 = vcvt.s32.f32 %v456
        %v473 = vcvt.s32.f32 %v457
        %v474 = vcvt.s32.f32 %v458
        %v475 = vcvt.s32.f32 %v459
        %v476 = vcvt.s32.f32 %v460
        %v477 = vcvt.s32.f32 %v461
        %s478 = sadd.s32 %s29, %s30
        %v479 = vlaneseq
        %v480 = vshrl.u32 %v479, 7
        %v481 = vadd.s32 %v480, 8
        %v482 = vadd.s32 %v480, 16
        %v483 = vadd.s32 %v480, 24
        %v484 = vlaneseq
        %v485 = vand.u32 %v484, 127
        %s486 = smul.u32 %s478, 32
        %v487 = vstv %s486
        %v488 = vadd.s32 %v487, %v480
        %v489 = vadd.s32 %v487, %v481
        %v490 = vadd.s32 %v487, %v482
        %v491 = vadd.s32 %v487, %v483
        %v492 = vmul.u32 %v488, 128
        %v493 = vmul.u32 %v489, 128
        %v494 = vmul.u32 %v490, 128
        %v495 = vmul.u32 %v491, 128
        %v496 = vadd.s32 %v492, %v485
        %v497 = vadd.s32 %v493, %v485
        %v498 = vadd.s32 %v494, %v485
        %v499 = vadd.s32 %v495, %v485
        %vm500 = vcmp.lt.s32.totalorder %v496, 256
        %vm501 = vcmp.lt.s32.totalorder %v497, 256
        %vm502 = vcmp.lt.s32.totalorder %v498, 256
        %vm503 = vcmp.lt.s32.totalorder %v499, 256
        %v504 = vsel %vm500, 1, 0
        %v505 = vsel %vm501, 1, 0
        %v506 = vsel %vm502, 1, 0
        %v507 = vsel %vm503, 1, 0
        %v508 = vcvt.s32.f32 %v504
        %v509 = vcvt.s32.f32 %v505
        %v510 = vcvt.s32.f32 %v506
        %v511 = vcvt.s32.f32 %v507
        %v512 = vmul.f32 %v409, %v508
        %v513 = vmul.f32 %v410, %v509
        %v514 = vmul.f32 %v411, %v510
        %v515 = vmul.f32 %v412, %v511
        %v516 = vmul.f32 %v413, %v508
        %v517 = vmul.f32 %v414, %v509
        %v518 = vmul.f32 %v415, %v510
        %v519 = vmul.f32 %v416, %v511
        %v520 = vmul.f32 %v417, %v508
        %v521 = vmul.f32 %v418, %v509
        %v522 = vmul.f32 %v419, %v510
        %v523 = vmul.f32 %v420, %v511
        %v524 = vmul.f32 %v421, %v508
        %v525 = vmul.f32 %v422, %v509
        %v526 = vmul.f32 %v423, %v510
        %v527 = vmul.f32 %v424, %v511
        %v528 = vmul.f32 %v462, %v508
        %v529 = vmul.f32 %v463, %v509
        %v530 = vmul.f32 %v464, %v510
        %v531 = vmul.f32 %v465, %v511
        %v532 = vmul.f32 %v466, %v508
        %v533 = vmul.f32 %v467, %v509
        %v534 = vmul.f32 %v468, %v510
        %v535 = vmul.f32 %v469, %v511
        %v536 = vmul.f32 %v470, %v508
        %v537 = vmul.f32 %v471, %v509
        %v538 = vmul.f32 %v472, %v510
        %v539 = vmul.f32 %v473, %v511
        %v540 = vmul.f32 %v474, %v508
        %v541 = vmul.f32 %v475, %v509
        %v542 = vmul.f32 %v476, %v510
        %v543 = vmul.f32 %v477, %v511
        %v544 = vld [vmem:[#allocation2] sm:$0xf]
        %v545 = vmul.f32 %v528, %v512
        %v546 = vmul.f32 %v529, %v513
        %v547 = vmul.f32 %v530, %v514
        %v548 = vmul.f32 %v531, %v515
        %v549 = vmul.f32 %v532, %v516
        %v550 = vmul.f32 %v533, %v517
        %v551 = vmul.f32 %v534, %v518
        %v552 = vmul.f32 %v535, %v519
        %v553 = vmul.f32 %v536, %v520
        %v554 = vmul.f32 %v537, %v521
        %v555 = vmul.f32 %v538, %v522
        %v556 = vmul.f32 %v539, %v523
        %v557 = vmul.f32 %v540, %v524
        %v558 = vmul.f32 %v541, %v525
        %v559 = vmul.f32 %v542, %v526
        %v560 = vmul.f32 %v543, %v527
        %v561 = vadd.f32 %v545, %v546
        %v562 = vadd.f32 %v561, %v547
        %v563 = vadd.f32 %v562, %v548
        %v564 = vrot.slane %v563, 4
        %v565 = vadd.f32 %v563, %v564
        %v566 = vrot.slane %v565, 2
        %v567 = vadd.f32 %v565, %v566
        %v568 = vrot.slane %v567, 1
        %v569 = vadd.f32 %v567, %v568
        %v570 = vadd.f32 %v549, %v550
        %v571 = vadd.f32 %v570, %v551
        %v572 = vadd.f32 %v571, %v552
        %v573 = vrot.slane %v572, 4
        %v574 = vadd.f32 %v572, %v573
        %v575 = vrot.slane %v574, 2
        %v576 = vadd.f32 %v574, %v575
        %v577 = vrot.slane %v576, 1
        %v578 = vadd.f32 %v576, %v577
        %v579 = vadd.f32 %v553, %v554
        %v580 = vadd.f32 %v579, %v555
        %v581 = vadd.f32 %v580, %v556
        %v582 = vrot.slane %v581, 4
        %v583 = vadd.f32 %v581, %v582
        %v584 = vrot.slane %v583, 2
        %v585 = vadd.f32 %v583, %v584
        %v586 = vrot.slane %v585, 1
        %v587 = vadd.f32 %v585, %v586
        %v588 = vadd.f32 %v557, %v558
        %v589 = vadd.f32 %v588, %v559
        %v590 = vadd.f32 %v589, %v560
        %v591 = vrot.slane %v590, 4
        %v592 = vadd.f32 %v590, %v591
        %v593 = vrot.slane %v592, 2
        %v594 = vadd.f32 %v592, %v593
        %v595 = vrot.slane %v594, 1
        %v596 = vadd.f32 %v594, %v595
        %vm601 = vcmask 1041409
        %v602 = vsel %vm601, %v578, %v569
        %vm603 = vcmask 1042434
        %v604 = vsel %vm603, %v587, %v602
        %vm605 = vcmask 1043459
        %v606 = vsel %vm605, %v596, %v604
        %v608 = vadd.f32 %v544, %v606
        %609 = vst [vmem:[#allocation2] sm:$0xf] %v608
        %s610 = scalar_lea.vmem [#allocation2], 4
        %v611 = vld [vmem:[%s610] sm:$0xf]
        %v612 = vadd.f32 %v512, %v513
        %v613 = vadd.f32 %v612, %v514
        %v614 = vadd.f32 %v613, %v515
        %v615 = vrot.slane %v614, 4
        %v616 = vadd.f32 %v614, %v615
        %v617 = vrot.slane %v616, 2
        %v618 = vadd.f32 %v616, %v617
        %v619 = vrot.slane %v618, 1
        %v620 = vadd.f32 %v618, %v619
        %v621 = vadd.f32 %v516, %v517
        %v622 = vadd.f32 %v621, %v518
        %v623 = vadd.f32 %v622, %v519
        %v624 = vrot.slane %v623, 4
        %v625 = vadd.f32 %v623, %v624
        %v626 = vrot.slane %v625, 2
        %v627 = vadd.f32 %v625, %v626
        %v628 = vrot.slane %v627, 1
        %v629 = vadd.f32 %v627, %v628
        %v630 = vadd.f32 %v520, %v521
        %v631 = vadd.f32 %v630, %v522
        %v632 = vadd.f32 %v631, %v523
        %v633 = vrot.slane %v632, 4
        %v634 = vadd.f32 %v632, %v633
        %v635 = vrot.slane %v634, 2
        %v636 = vadd.f32 %v634, %v635
        %v637 = vrot.slane %v636, 1
        %v638 = vadd.f32 %v636, %v637
        %v639 = vadd.f32 %v524, %v525
        %v640 = vadd.f32 %v639, %v526
        %v641 = vadd.f32 %v640, %v527
        %v642 = vrot.slane %v641, 4
        %v643 = vadd.f32 %v641, %v642
        %v644 = vrot.slane %v643, 2
        %v645 = vadd.f32 %v643, %v644
        %v646 = vrot.slane %v645, 1
        %v647 = vadd.f32 %v645, %v646
        %v652 = vsel %vm601, %v629, %v620
        %v653 = vsel %vm603, %v638, %v652
        %v654 = vsel %vm605, %v647, %v653
        %v656 = vadd.f32 %v611, %v654
        %657 = vst [vmem:[%s610] sm:$0xf] %v656
        %s658 = scalar_lea.vmem [#allocation2], 8
        %v659 = vld [vmem:[%s658] sm:$0xf]
        %v660 = vadd.f32 %v528, %v529
        %v661 = vadd.f32 %v660, %v530
        %v662 = vadd.f32 %v661, %v531
        %v663 = vrot.slane %v662, 4
        %v664 = vadd.f32 %v662, %v663
        %v665 = vrot.slane %v664, 2
        %v666 = vadd.f32 %v664, %v665
        %v667 = vrot.slane %v666, 1
        %v668 = vadd.f32 %v666, %v667
        %v669 = vadd.f32 %v532, %v533
        %v670 = vadd.f32 %v669, %v534
        %v671 = vadd.f32 %v670, %v535
        %v672 = vrot.slane %v671, 4
        %v673 = vadd.f32 %v671, %v672
        %v674 = vrot.slane %v673, 2
        %v675 = vadd.f32 %v673, %v674
        %v676 = vrot.slane %v675, 1
        %v677 = vadd.f32 %v675, %v676
        %v678 = vadd.f32 %v536, %v537
        %v679 = vadd.f32 %v678, %v538
        %v680 = vadd.f32 %v679, %v539
        %v681 = vrot.slane %v680, 4
        %v682 = vadd.f32 %v680, %v681
        %v683 = vrot.slane %v682, 2
        %v684 = vadd.f32 %v682, %v683
        %v685 = vrot.slane %v684, 1
        %v686 = vadd.f32 %v684, %v685
        %v687 = vadd.f32 %v540, %v541
        %v688 = vadd.f32 %v687, %v542
        %v689 = vadd.f32 %v688, %v543
        %v690 = vrot.slane %v689, 4
        %v691 = vadd.f32 %v689, %v690
        %v692 = vrot.slane %v691, 2
        %v693 = vadd.f32 %v691, %v692
        %v694 = vrot.slane %v693, 1
        %v695 = vadd.f32 %v693, %v694
        %v700 = vsel %vm601, %v677, %v668
        %v701 = vsel %vm603, %v686, %v700
        %v702 = vsel %vm605, %v695, %v701
        %v704 = vadd.f32 %v659, %v702
        %705 = vst [vmem:[%s658] sm:$0xf] %v704
        %s706 = scalar_lea.vmem %s271, 32 [#allocation8]
        %v707 = vld [vmem:[%s706] sm:$0xff]
        %v708 = vld [vmem:[%s706 + $0x8] sm:$0xff]
        %v709 = vld [vmem:[%s706 + $0x10] sm:$0xff]
        %v710 = vld [vmem:[%s706 + $0x18] sm:$0xff]
        %v711 = vld [vmem:[%s706 + $0x20] sm:$0xff]
        %v712 = vld [vmem:[%s706 + $0x28] sm:$0xff]
        %v713 = vld [vmem:[%s706 + $0x30] sm:$0xff]
        %v714 = vld [vmem:[%s706 + $0x38] sm:$0xff]
        %v715 = vld [vmem:[%s706 + $0x40] sm:$0xff]
        %v716 = vld [vmem:[%s706 + $0x48] sm:$0xff]
        %v717 = vld [vmem:[%s706 + $0x50] sm:$0xff]
        %v718 = vld [vmem:[%s706 + $0x58] sm:$0xff]
        %s719 = scalar_lea.vmem [#allocation2], 12
        %v720 = vld [vmem:[%s719 + $0x1] sm:$0x7]
        %v721 = vmul.f32 %v516, %v707
        %v722 = vmul.f32 %v517, %v708
        %v723 = vmul.f32 %v518, %v709
        %v724 = vmul.f32 %v519, %v710
        %v725 = vmul.f32 %v520, %v711
        %v726 = vmul.f32 %v521, %v712
        %v727 = vmul.f32 %v522, %v713
        %v728 = vmul.f32 %v523, %v714
        %v729 = vmul.f32 %v524, %v715
        %v730 = vmul.f32 %v525, %v716
        %v731 = vmul.f32 %v526, %v717
        %v732 = vmul.f32 %v527, %v718
        %v733 = vadd.f32 %v721, %v722
        %v734 = vadd.f32 %v733, %v723
        %v735 = vadd.f32 %v734, %v724
        %v736 = vrot.slane %v735, 4
        %v737 = vadd.f32 %v735, %v736
        %v738 = vrot.slane %v737, 2
        %v739 = vadd.f32 %v737, %v738
        %v740 = vrot.slane %v739, 1
        %v741 = vadd.f32 %v739, %v740
        %v742 = vadd.f32 %v725, %v726
        %v743 = vadd.f32 %v742, %v727
        %v744 = vadd.f32 %v743, %v728
        %v745 = vrot.slane %v744, 4
        %v746 = vadd.f32 %v744, %v745
        %v747 = vrot.slane %v746, 2
        %v748 = vadd.f32 %v746, %v747
        %v749 = vrot.slane %v748, 1
        %v750 = vadd.f32 %v748, %v749
        %v751 = vadd.f32 %v729, %v730
        %v752 = vadd.f32 %v751, %v731
        %v753 = vadd.f32 %v752, %v732
        %v754 = vrot.slane %v753, 4
        %v755 = vadd.f32 %v753, %v754
        %v756 = vrot.slane %v755, 2
        %v757 = vadd.f32 %v755, %v756
        %v758 = vrot.slane %v757, 1
        %v759 = vadd.f32 %v757, %v758
        %v763 = vsel %vm601, %v750, %v741
        %v764 = vsel %vm603, %v759, %v763
        %v766 = vadd.f32 %v720, %v764
        %767 = vst [vmem:[%s719 + $0x1] sm:$0x7] %v766
        // Predicated region
        $region49: #{tpu_custom_call.1} parent=31 // pred_check
          %p768 = pneg %p309
        $region50: #{tpu_custom_call.1} parent=31 // pred_check_branch
          %770 = sbr.rel (%p768) target = $region52
        $region51: #{tpu_custom_call.1} parent=31 // pred_region
          %v771 = vld [vmem:[#allocation2] sm:$0xf]
          %v772 = vld [vmem:[#allocation2 + $0x4] sm:$0xf]
          %v773 = vld [vmem:[#allocation2 + $0x8] sm:$0xf]
          %v774 = vld [vmem:[#allocation2 + $0xc] sm:$0xf]
          %775 = vst [vmem:[%s303] sm:$0xf] %v771
          %776 = vst [vmem:[%s303 + $0x4] sm:$0xf] %v772
          %777 = vst [vmem:[%s303 + $0x8] sm:$0xf] %v773
          %778 = vst [vmem:[%s303 + $0xc] sm:$0xf] %v774
        $region52: #{tpu_custom_call.1} parent=31 // pred_fallthru
          _
        %s779 = sand.u32 %s142, 1
        %s780 = scalar_lea.sflag [#allocation5], %s779
        %s781 = sand.u32 %s142, 1
        %s782 = smul.addr %s781, 16
        %s783 = scalar_lea.vmem [#allocation9], %s782
        // Predicated region
        $region53: #{tpu_custom_call.1} parent=31 // pred_check
          %p784 = pneg %p152
        $region54: #{tpu_custom_call.1} parent=31 // pred_check_branch
          %786 = sbr.rel (%p784) target = $region56
        $region55: #{tpu_custom_call.1} parent=31 // pred_region
          %s788 = ssub.s32 256, 256
          %789 = vsyncadd %s780, %s788
          %s790 = smul.addr %s29, 4
          %s791 = smul.addr %s28, 4
          %s792 = sadd.s32 %s790, %s791
          %s793 = smul.addr %s792, 64
          %s794 = scalar_lea.hbm %s3, %s793
          %s795 = sshll.u32 %s783, 4
          %s796 = int_to_ptr.vmem [resolvable:$true] %s795
          %801 = dma.vmem_to_hbm [thread:$0]  %s796, 256, %s794, %s780, 64, 64, 4
        $region56: #{tpu_custom_call.1} parent=31 // pred_fallthru
          _
      $region32: #{tpu_custom_call.1} parent=5 // pred_fallthru
        _
      %p802 = scmp.le.s32.totalorder 2, %s18
      // Predicated region
      $region57: #{tpu_custom_call.1} parent=5 // pred_check
        %p803 = pneg %p802
      $region58: #{tpu_custom_call.1} parent=5 // pred_check_branch
        %805 = sbr.rel (%p803) target = $region60
      $region59: #{tpu_custom_call.1} parent=5 // pred_region
        %s806 = ssub.s32 %s18, 2
        // Predicated region
        $region61: #{tpu_custom_call.1} parent=59 // pred_check
          %p807 = pneg %p158
        $region62: #{tpu_custom_call.1} parent=59 // pred_check_branch
          %809 = sbr.rel (%p807) target = $region64
        $region63: #{tpu_custom_call.1} parent=59 // pred_region
          %s810 = sand.u32 %s143, 1
          %s811 = scalar_lea.sflag [#allocation5], %s810
          %s812 = sand.u32 %s143, 1
          %s813 = smul.addr %s812, 16
          %s814 = scalar_lea.vmem [#allocation9], %s813
          %815 = dma.done %s811, 256
        $region64: #{tpu_custom_call.1} parent=59 // pred_fallthru
          _
      $region60: #{tpu_custom_call.1} parent=5 // pred_fallthru
        _
    $region6: #{tpu_custom_call.1} parent=1 // loop_footer
      %s22 = sadd.s32 1, %s18
    $region7: #{tpu_custom_call.1} parent=1 // loop_footer_branch
      %17 = sbr.rel target = $region3
    $region8: #{tpu_custom_call.1} parent=1 // loop_exit
      _
    %816 = vsyncpa [#allocation4], 1
    %s817 = scalar_lea.sflag [#allocation4], 1
    %818 = vsyncpa %s817, 1
    %819 = vsyncpa [#allocation7], 1
    %s820 = scalar_lea.sflag [#allocation7], 1
    %821 = vsyncpa %s820, 1
    %822 = vsyncpa [#allocation5], 1
    %s823 = scalar_lea.sflag [#allocation5], 1
    %824 = vsyncpa %s823, 1

</llo_original>
